<compile_context>
chip_gen: v7x
topology: tpu7x:2x2x1
jax: 0.10.0
libtpu: 0.0.40
codegen_flags: <defaults>
</compile_context>

<pallas_src>
import functools
import itertools

import jax
import jax.numpy as jnp
from jax.experimental import pallas as pl
from jax.experimental.pallas import tpu as pltpu


_NEG_BIG = -1e30  # bias for padded rule columns -> softmax weight underflows to 0 (finite: no NaN)


def _firing_kernel(xa_ref, w_ref, out_ref, *, precision):
    """One batch tile.

    xa:  [tn, 2D+1]  rows are [xs_1^2 .. xs_D^2, xs_1 .. xs_D, 1]   (xs = x - mu)
    w:   [2D+1, Rp]  rows are [w_rd ; -2*w_rd*cs_rd ; bias_r]
    out: [tn, Rp]    softmax over the (lane-padded) rule axis
    """
    # Single tiny-K MXU matmul; bias folded in via the ones column.
    z = jnp.dot(xa_ref[...], w_ref[...],
                preferred_element_type=jnp.float32, precision=precision)

    # Numerically stable softmax over rules (lane axis).  Padded rules have z ~ -1e30 -> weight 0.
    m = jnp.max(z, axis=-1, keepdims=True)
    e = jnp.exp(z - m)
    s = jnp.sum(e, axis=-1, keepdims=True)
    inv = pl.reciprocal(s, approx=True)       # EUP slot, off the VALU critical path
    inv = inv * (2.0 - s * inv)               # one Newton step on [tn,1]: ~f32 accuracy, ~free
    out_ref[...] = (e * inv).astype(out_ref.dtype)


def _vmem_budget_bytes():
    """Generation-aware (tiling_budget, vmem_limit) in bytes."""
    try:
        cap = int(pltpu.get_tpu_info().vmem_capacity_bytes)
    except Exception:
        cap = 64 * 1024 * 1024                       # conservative: assume v7x-sized VMEM
    if cap >= 100 * 1024 * 1024:                     # v5e / v6e: 128 MiB physical
        return 40 * 1024 * 1024, 80 * 1024 * 1024
    return 16 * 1024 * 1024, 32 * 1024 * 1024        # v7x: 64 MiB physical


def _round8(v):
    return ((v + 7) // 8) * 8


def _pick_batch_tile(n, k, rp, vmem_budget_bytes):
    """Batch tile: largest power-of-two (<=512) fitting VMEM, then rebalanced so the grid has
    >=4 (even) steps when the batch allows and per-tile padding stays small."""
    n8 = _round8(n)
    resident = 2 * k * rp * 4                        # fused weight, double-buffered by Pallas
    tn = 512                                         # ~85% of HBM roofline per measured tiling data
    while tn > 8:
        # xa2 + out double buffers + ~2 live f32 [tn, Rp] temporaries (z, e)
        need = resident + 4 * tn * (2 * k + 4 * rp)
        if need <= vmem_budget_bytes:
            break
        tn //= 2
    # Grid-step preference: >=4 steps (>=2 per v7x TensorCore) and an even count when possible,
    # with tiles balanced to minimize batch padding (heuristic, exactness not required).
    steps = max(pl.cdiv(n8, tn), 4 if n8 >= 32 else 1)
    if steps > 1 and steps % 2 == 1:
        steps += 1
    tn = min(tn, _round8(pl.cdiv(n8, steps)))
    return max(tn, 8)


def antecedent_share_gmf(x, center, sigma, rule_index, *, high_dim=False,
                         eps=1e-8, tn=None, out_dtype=jnp.float32,
                         precision=jax.lax.Precision.HIGHEST, unpad=True):
    """Pallas forward of AntecedentShareGMF.

    x:          [N, D] float32
    center:     [D, M] float32
    sigma:      [D, M] float32
    rule_index: [R, D] int32, entries in [0, M)   (R = M**D)
    out_dtype:  set to jnp.bfloat16 to halve output HBM/vst cost when the consumer tolerates it.
    unpad:      if False, return the padded [Np, Rp] buffer (padded rule columns are exactly 0,
                padded rows ignorable) and skip the post-kernel slice copy.
    returns:    firing levels (softmax over rules).
    """
    N, D = x.shape
    R = rule_index.shape[0]
    K = 2 * D + 1

    # ---- glue (plain JAX): gather per-rule params and fold constants --------------------
    x = x.astype(jnp.float32)
    d_idx = jnp.arange(D)[None, :]                                  # [1, D]
    c_r = center[d_idx, rule_index].astype(jnp.float32)             # [R, D]
    s_r = sigma[d_idx, rule_index].astype(jnp.float32)              # [R, D]
    scale = (1.0 / D) if high_dim else 1.0                          # HTSK mean vs. plain sum
    w_r = (-0.5 * scale) / (s_r * s_r + eps)                        # [R, D]

    # Center x and the rule centers by the per-feature batch mean: (xs - cs) == (x - c)
    # exactly, but the expanded quadratic cancels far less when x ~ c and sigma is small.
    mu = jnp.mean(x, axis=0, keepdims=True)                         # [1, D]
    xs = x - mu                                                     # [N, D]
    cs = c_r - mu                                                   # [R, D]

    # Fused weight matrix: one [K, R] table -> a single tiny-K MXU matmul in the kernel.
    bias = jnp.sum(w_r * cs * cs, axis=1)                           # [R]
    w = jnp.concatenate([w_r.T, (-2.0 * w_r * cs).T, bias[None, :]], axis=0)   # [K, R]

    # ---- pad rules to a lane-dense multiple of 128 (unmasked vector stores) --------------
    Rp = pl.cdiv(R, 128) * 128
    if Rp != R:
        pad = jnp.zeros((K, Rp - R), jnp.float32).at[K - 1, :].set(_NEG_BIG)
        w = jnp.concatenate([w, pad], axis=1)

    # ---- pick batch tile (generation-aware VMEM budget) & pad N --------------------------
    budget, vmem_limit = _vmem_budget_bytes()
    if tn is None:
        tn = _pick_batch_tile(N, K, Rp, budget)
    assert tn % 8 == 0, "batch tile must be a multiple of 8 sublanes"
    Np = pl.cdiv(N, tn) * tn

    xa2 = jnp.concatenate([xs * xs, xs, jnp.ones((N, 1), jnp.float32)], axis=1)   # [N, K]
    if Np != N:
        # zero rows -> harmless uniform softmax on padded rows; sliced off below (if unpad)
        xa2 = jnp.pad(xa2, ((0, Np - N), (0, 0)))

    out = pl.pallas_call(
        functools.partial(_firing_kernel, precision=precision),
        out_shape=jax.ShapeDtypeStruct((Np, Rp), out_dtype),
        grid_spec=pltpu.PrefetchScalarGridSpec(
            num_scalar_prefetch=0,
            grid=(Np // tn,),
            in_specs=[
                pl.BlockSpec((tn, K), lambda i: (i, 0)),   # xa2 batch tile
                pl.BlockSpec((K, Rp), lambda i: (0, 0)),   # fused weights (constant across grid)
            ],
            out_specs=pl.BlockSpec((tn, Rp), lambda i: (i, 0)),
        ),
        compiler_params=pltpu.CompilerParams(
            dimension_semantics=("parallel",),
            vmem_limit_bytes=vmem_limit,
        ),
    )(xa2, w)

    if unpad:
        # NOTE: this is an extra XLA copy when padding exists; pass unpad=False to avoid it.
        return out[:N, :R]
    return out


def reference_forward(x, center, sigma, rule_index, *, high_dim=False, eps=1e-8):
    """Pure-JAX mirror of the PyTorch forward (direct formula, for checking)."""
    D = x.shape[1]
    d_idx = jnp.arange(D)[None, :]
    c_r = center[d_idx, rule_index]                 # [R, D]
    s_r = sigma[d_idx, rule_index]                  # [R, D]
    zr = -0.5 * (x[:, None, :] - c_r[None]) ** 2 / (s_r[None] ** 2 + eps)
    z = jnp.mean(zr, axis=-1) if high_dim else jnp.sum(zr, axis=-1)
    return jax.nn.softmax(z, axis=-1)


if __name__ == "__main__":
    # Small config consistent with the module: D features, M MFs -> R = M**D rules.
    D, M = 4, 2
    R = M ** D
    init_sigma = 1.0
    eps = 1e-8

    key = jax.random.PRNGKey(0)
    kx1, kx2, kc = jax.random.split(key, 3)

    # Deterministic "parameters" (module __init__: center ~ N(0,1), sigma = init_sigma).
    center = jax.random.normal(kc, (D, M), dtype=jnp.float32)
    sigma = jnp.ones((D, M), dtype=jnp.float32) * init_sigma

    # rule_index = itertools.product over M MFs per feature -> [R, D]
    rule_index = jnp.asarray(
        list(itertools.product(*[range(M) for _ in range(D)])), dtype=jnp.int32)

    # Case 1: even batch, original TSK defuzzification (sum over features)
    x1 = jax.random.normal(kx1, (64, D), dtype=jnp.float32)
    out1 = jax.block_until_ready(
        antecedent_share_gmf(x1, center, sigma, rule_index, high_dim=False, eps=eps))
    ref1 = reference_forward(x1, center, sigma, rule_index, high_dim=False, eps=eps)
    assert out1.shape == (64, R)
    assert jnp.allclose(out1, ref1, rtol=1e-4, atol=1e-5), (
        f"case1 max abs err {float(jnp.max(jnp.abs(out1 - ref1)))}")

    # Case 2: odd batch (exercises cdiv/padding path), HTSK defuzzification (mean)
    x2 = jax.random.normal(kx2, (50, D), dtype=jnp.float32)
    out2 = jax.block_until_ready(
        antecedent_share_gmf(x2, center, sigma, rule_index, high_dim=True, eps=eps))
    ref2 = reference_forward(x2, center, sigma, rule_index, high_dim=True, eps=eps)
    assert out2.shape == (50, R)
    assert jnp.allclose(out2, ref2, rtol=1e-4, atol=1e-5), (
        f"case2 max abs err {float(jnp.max(jnp.abs(out2 - ref2)))}")

    # Case 3: bf16 output option (halves writeback bytes on store-bound v5e/v6e), loose tolerance.
    out3 = jax.block_until_ready(
        antecedent_share_gmf(x1, center, sigma, rule_index, high_dim=False, eps=eps,
                             out_dtype=jnp.bfloat16))
    assert out3.shape == (64, R)
    assert jnp.allclose(out3.astype(jnp.float32), ref1, atol=1e-2), (
        f"case3 max abs err {float(jnp.max(jnp.abs(out3.astype(jnp.float32) - ref1)))}")

    print("KERNEL_OK")
</pallas_src>

<mosaic_0001>
module attributes {stable_mosaic.version = 11 : i64} {
  func.func @_firing_kernel(%arg0: i32, %arg1: memref<16x9xf32, #tpu.memory_space<vmem>>, %arg2: memref<9x128xf32, #tpu.memory_space<vmem>>, %arg3: memref<16x128xf32, #tpu.memory_space<vmem>>) attributes {dimension_semantics = [#tpu.dimension_semantics<parallel>], iteration_bounds = array<i64: 4>, scalar_prefetch = 0 : i64, scratch_operands = 0 : i64, tpu.core_type = #tpu.core_type<tc>, window_params = [{transform_indices = @transform_0, window_bounds = array<i64: 16, 9>}, {pipeline_mode = #tpu.pipeline_mode<synchronous>, transform_indices = @transform_1, window_bounds = array<i64: 9, 128>}, {transform_indices = @transform_2, window_bounds = array<i64: 16, 128>}]} {
    %c0 = arith.constant 0 : index
    %c0_0 = arith.constant 0 : index
    %0 = vector.load %arg1[%c0, %c0_0] : memref<16x9xf32, #tpu.memory_space<vmem>>, vector<16x9xf32>
    %c0_1 = arith.constant 0 : index
    %c0_2 = arith.constant 0 : index
    %1 = vector.load %arg2[%c0_1, %c0_2] : memref<9x128xf32, #tpu.memory_space<vmem>>, vector<9x128xf32>
    %cst = arith.constant dense<0.000000e+00> : vector<16x128xf32>
    %2 = tpu.matmul %0, %1, %cst {dimension_numbers = #tpu.dot_dimension_numbers<[1], [0], [0], [1], [0, 0, 1, 1], [], []>, precision = #tpu.contract_precision<fp32>} : vector<16x9xf32>, vector<9x128xf32>, vector<16x128xf32> -> vector<16x128xf32>
    %cst_3 = arith.constant dense<0xFF800000> : vector<16xf32>
    %3 = vector.multi_reduction <maximumf>, %2, %cst_3 [1] : vector<16x128xf32> to vector<16xf32>
    %4 = vector.shape_cast %3 : vector<16xf32> to vector<16x1xf32>
    %5 = vector.broadcast %4 : vector<16x1xf32> to vector<16x128xf32>
    %6 = arith.subf %2, %5 : vector<16x128xf32>
    %7 = math.exp %6 : vector<16x128xf32>
    %cst_4 = arith.constant dense<0.000000e+00> : vector<16xf32>
    %8 = vector.multi_reduction <add>, %7, %cst_4 [1] : vector<16x128xf32> to vector<16xf32>
    %9 = vector.shape_cast %8 : vector<16xf32> to vector<16x1xf32>
    %10 = tpu.reciprocal %9 {approx = true} : vector<16x1xf32> -> vector<16x1xf32>
    %11 = arith.mulf %9, %10 : vector<16x1xf32>
    %cst_5 = arith.constant 2.000000e+00 : f32
    %12 = vector.broadcast %cst_5 : f32 to vector<16x1xf32>
    %13 = arith.subf %12, %11 : vector<16x1xf32>
    %14 = arith.mulf %10, %13 : vector<16x1xf32>
    %15 = vector.broadcast %14 : vector<16x1xf32> to vector<16x128xf32>
    %16 = arith.mulf %7, %15 : vector<16x128xf32>
    %c0_6 = arith.constant 0 : index
    %c0_7 = arith.constant 0 : index
    %17 = vector.load %arg3[%c0_6, %c0_7] : memref<16x128xf32, #tpu.memory_space<vmem>>, vector<16x128xf32>
    tpu.vector_store %arg3[%c0_6, %c0_7], %16 {strides = array<i32>} : memref<16x128xf32, #tpu.memory_space<vmem>>, vector<16x128xf32>,
    return
  }
  func.func @transform_0(%arg0: i32) -> (i32, i32) {
    %c0_i32 = arith.constant 0 : i32
    %c0_i32_0 = arith.constant 0 : i32
    return %arg0, %c0_i32 : i32, i32
  }
  func.func @transform_1(%arg0: i32) -> (i32, i32) {
    %c0_i32 = arith.constant 0 : i32
    %c0_i32_0 = arith.constant 0 : i32
    %c0_i32_1 = arith.constant 0 : i32
    return %c0_i32, %c0_i32_0 : i32, i32
  }
  func.func @transform_2(%arg0: i32) -> (i32, i32) {
    %c0_i32 = arith.constant 0 : i32
    %c0_i32_0 = arith.constant 0 : i32
    return %arg0, %c0_i32 : i32, i32
  }
}

</mosaic_0001>

<llo_original>
// kernel: tpu_custom_call.1
$region0: #{tpu_custom_call.1}
  #allocation0 [shape = 'u32[]', space=smem, size = 0x4, offset = 0x4, fixed_abs, tag = 'smem constant byte address 0x4 - core index']
  #allocation1 [shape = 'u32[144,128]{1,0:T(1,128)}', space=vmem, size = 0x12000, scoped, tag = 'internal scratch']
  %s0 = inlined_call_operand.vmem [shape: f32[64,9], index: 0, kind: input, shape index: {}]
  %s1 = inlined_call_operand.vmem [shape: f32[9,128], index: 1, kind: input, shape index: {}]
  %s2 = inlined_call_operand.hbm [shape: f32[64,128], index: 2, kind: output, shape index: {}]
  %s3 = sld [smem:[#allocation0]]
  $region41: #{tpu_custom_call.1} parent=0
    _
  %s5 = ssub.s32 1, %s3
  %s6 = scalar_select 0, %s5, %s3
  $region1: #{tpu_custom_call.1} parent=0
    #allocation2 [shape = 'u8[16384]{0}', space=vmem, size = 0x4000, scoped, tag = 'output window, operand 0']
    #allocation3 [shape = 's32[2]{0}', space=sflag, size = 0x8, scoped, tag = 'scoped memory for tpu_custom_call.1']
    %7 = vsyncpa [#allocation3], 0
    %s8 = scalar_lea.sflag [#allocation3], 1
    %9 = vsyncpa %s8, 0
    loop: start=0, step=1, limit=6
    $region2: #{tpu_custom_call.1} parent=1 // loop_pre_header
      _
    $region3: #{tpu_custom_call.1} parent=1 // loop_header
      %s11 = sphi 0, %s15
      %p12 = scmp.ge.s32.totalorder %s11, 6
      %s21 = sphi 0, %s23
      %s24 = sphi 0, %s21
      %s25 = sphi 0, %s24
      %s41 = sphi 0, %s25
      %s45 = sphi 0, %s45
      %s47 = sphi 0, %s45
      %s48 = sphi 0, %s47
      %s62 = sphi 0, %s48
      %s68 = sphi 0, %s70
      %s71 = sphi 0, %s68
      %s72 = sphi 0, %s71
      %s88 = sphi 0, %s72
    $region4: #{tpu_custom_call.1} parent=1 // loop_header_branch
      %14 = sbr.rel (%p12) target = $region8
    $region5: #{tpu_custom_call.1} parent=1 // loop_body
      %s16 = ssub.s32 %s11, 1
      %s17 = ssub.s32 %s11, 2
      %s18 = sadd.s32 %s11, 1
      %s19 = ssub.s32 %s11, %s18
      %p20 = scmp.eq.s32.totalorder %s19, 0
      %s22 = sadd.s32 %s21, 1
      %s23 = scalar_select %p20, %s21, %s22
      %p26 = pneg %p20
      %p27 = scmp.eq.s32.totalorder %s11, 3
      %p28 = por %p26, %p27
      %p29 = scmp.ne.s32.totalorder %s21, %s24
      %p30 = scmp.eq.s32.totalorder %s11, 0
      %p31 = por %p29, %p30
      %p32 = scmp.ne.s32.totalorder %s21, %s24
      %p33 = scmp.eq.s32.totalorder %s16, 3
      %p34 = por %p32, %p33
      %p35 = scmp.ne.s32.totalorder %s24, %s25
      %p36 = scmp.eq.s32.totalorder %s16, 0
      %p37 = por %p35, %p36
      %p38 = scmp.ne.s32.totalorder %s24, %s25
      %p39 = scmp.eq.s32.totalorder %s17, 3
      %p40 = por %p38, %p39
      %p42 = scmp.ne.s32.totalorder %s25, %s41
      %p43 = scmp.eq.s32.totalorder %s17, 0
      %p44 = por %p42, %p43
      %s46 = sadd.s32 %s45, 1
      %p49 = scmp.eq.s32.totalorder %s11, 3
      %p50 = scmp.ne.s32.totalorder %s45, %s47
      %p51 = scmp.eq.s32.totalorder %s11, 0
      %p52 = por %p50, %p51
      %p53 = scmp.ne.s32.totalorder %s45, %s47
      %p54 = scmp.eq.s32.totalorder %s16, 3
      %p55 = por %p53, %p54
      %p56 = scmp.ne.s32.totalorder %s47, %s48
      %p57 = scmp.eq.s32.totalorder %s16, 0
      %p58 = por %p56, %p57
      %p59 = scmp.ne.s32.totalorder %s47, %s48
      %p60 = scmp.eq.s32.totalorder %s17, 3
      %p61 = por %p59, %p60
      %p63 = scmp.ne.s32.totalorder %s48, %s62
      %p64 = scmp.eq.s32.totalorder %s17, 0
      %p65 = por %p63, %p64
      %s66 = ssub.s32 %s11, %s18
      %p67 = scmp.eq.s32.totalorder %s66, 0
      %s69 = sadd.s32 %s68, 1
      %s70 = scalar_select %p67, %s68, %s69
      %p73 = pneg %p67
      %p74 = scmp.eq.s32.totalorder %s11, 3
      %p75 = por %p73, %p74
      %p76 = scmp.ne.s32.totalorder %s68, %s71
      %p77 = scmp.eq.s32.totalorder %s11, 0
      %p78 = por %p76, %p77
      %p79 = scmp.ne.s32.totalorder %s68, %s71
      %p80 = scmp.eq.s32.totalorder %s16, 3
      %p81 = por %p79, %p80
      %p82 = scmp.ne.s32.totalorder %s71, %s72
      %p83 = scmp.eq.s32.totalorder %s16, 0
      %p84 = por %p82, %p83
      %p85 = scmp.ne.s32.totalorder %s71, %s72
      %p86 = scmp.eq.s32.totalorder %s17, 3
      %p87 = por %p85, %p86
      %p89 = scmp.ne.s32.totalorder %s72, %s88
      %p90 = scmp.eq.s32.totalorder %s17, 0
      %p91 = por %p89, %p90
      %p92 = scmp.le.s32.totalorder 1, %s11
      %p93 = scmp.lt.s32.totalorder %s11, 5
      %p94 = pnand %p92, %p93
      %p95 = pneg %p94
      // Predicated region
      $region9: #{tpu_custom_call.1} parent=5 // pred_check
        _
      $region10: #{tpu_custom_call.1} parent=5 // pred_check_branch
        %97 = sbr.rel (%p94) target = $region12
      $region11: #{tpu_custom_call.1} parent=5 // pred_region
        %s98 = ssub.s32 %s11, 1
        // Predicated region
        $region13: #{tpu_custom_call.1} parent=11 // pred_check
          %p99 = pneg %p58
        $region14: #{tpu_custom_call.1} parent=11 // pred_check_branch
          %101 = sbr.rel (%p99) target = $region16
        $region15: #{tpu_custom_call.1} parent=11 // pred_region
          _
        $region16: #{tpu_custom_call.1} parent=11 // pred_fallthru
          _
      $region12: #{tpu_custom_call.1} parent=5 // pred_fallthru
        _
      %p102 = scmp.lt.s32.totalorder %s11, 4
      // Predicated region
      $region17: #{tpu_custom_call.1} parent=5 // pred_check
        %p103 = pneg %p102
      $region18: #{tpu_custom_call.1} parent=5 // pred_check_branch
        %105 = sbr.rel (%p103) target = $region20
      $region19: #{tpu_custom_call.1} parent=5 // pred_region
        // Predicated region
        $region21: #{tpu_custom_call.1} parent=19 // pred_check
          %p106 = pneg %p31
        $region22: #{tpu_custom_call.1} parent=19 // pred_check_branch
          %108 = sbr.rel (%p106) target = $region24
        $region23: #{tpu_custom_call.1} parent=19 // pred_region
          %s109 = smul.u32 2, %s11
          %p110 = scmp.lt.s32.totalorder %s109, 7
          %s111 = scalar_select %p110, %s109, 7
          %s112 = smul.addr %s111, 8
          %s113 = scalar_lea.vmem %s0, %s112
          %s114 = smul.u32 2, %s11
        $region24: #{tpu_custom_call.1} parent=19 // pred_fallthru
          _
      $region20: #{tpu_custom_call.1} parent=5 // pred_fallthru
        _
      %p115 = scmp.le.s32.totalorder 1, %s11
      %p116 = scmp.lt.s32.totalorder %s11, 5
      %p117 = pnand %p115, %p116
      %p118 = pneg %p117
      // Predicated region
      $region25: #{tpu_custom_call.1} parent=5 // pred_check
        _
      $region26: #{tpu_custom_call.1} parent=5 // pred_check_branch
        %120 = sbr.rel (%p117) target = $region28
      $region27: #{tpu_custom_call.1} parent=5 // pred_region
        %s121 = ssub.s32 %s11, 1
        %s122 = smul.u32 2, %s16
        %p123 = scmp.lt.s32.totalorder %s122, 7
        %s124 = scalar_select %p123, %s122, 7
        %s125 = smul.addr %s124, 8
        %s126 = scalar_lea.vmem %s0, %s125
        %p127 = pneg %p37
        %p128 = pneg %p34
        %p129 = pneg %p58
        %p130 = pneg %p55
        %p131 = pneg %p84
        %p132 = pneg %p81
        %s133 = sand.u32 %s71, 1
        %s134 = scalar_lea.sflag [#allocation3], %s133
        %s135 = sand.u32 %s71, 1
        %s136 = smul.addr %s135, 16
        %s137 = scalar_lea.vmem [#allocation2], %s136
        %s138 = smul.u32 2, %s16
        %p139 = scmp.lt.s32.totalorder %s138, 7
        %s140 = scalar_select %p139, %s138, 7
        %s141 = smul.addr %s140, 8
        %s142 = scalar_lea.vmem %s0, %s141
        %s143 = smul.u32 2, %s16
        %s144 = smul.u32 2, %s16
        %v145 = vld [vmem:[%s142] sm:$0xff]
        %v146 = vld [vmem:[%s142 + $0x8] sm:$0xff]
        %v147 = vld [vmem:[%s1] sm:$0xff]
        %v148 = vld [vmem:[%s1 + $0x8] sm:$0x1]
        %vm149 = vcmask 72704
        %v151 = vsel %vm149, %v145, 0
        %v154 = vsel %vm149, %v146, 0
        %vm156 = vcmask 1040384
        %v158 = vsel %vm156, %v148, 0
        %160 = vmatprep.subr.mxu0 0.0
        %v161 = vand.u32 %v147, 4294901760
        %162 = vmatpush1.msra.mxu0 %v161
        %163 = vmatprep.subr.mxu0 0.0
        %v164 = vand.u32 %v158, 4294901760
        %165 = vmatpush1.msra.mxu0 %v164
        %166 = vmatprep.subr.mxu0 0.0
        %167 = vmatpush1.msra.mxu0 0.0
        %168 = vmatprep.subr.mxu0 0.0
        %169 = vmatpush1.msra.mxu0 0.0
        %170 = vmatprep.subr.mxu0 0.0
        %171 = vmatpush1.msra.mxu0 0.0
        %172 = vmatprep.subr.mxu0 0.0
        %173 = vmatpush1.msra.mxu0 0.0
        %174 = vmatprep.subr.mxu0 0.0
        %175 = vmatpush1.msra.mxu0 0.0
        %176 = vmatprep.subr.mxu0 0.0
        %177 = vmatpush1.msra.mxu0 0.0
        %178 = vmatprep.subr.mxu0 0.0
        %179 = vmatpush1.msra.mxu0 0.0
        %180 = vmatprep.subr.mxu0 0.0
        %181 = vmatpush1.msra.mxu0 0.0
        %182 = vmatprep.subr.mxu0 0.0
        %183 = vmatpush1.msra.mxu0 0.0
        %184 = vmatprep.subr.mxu0 0.0
        %185 = vmatpush1.msra.mxu0 0.0
        %186 = vmatprep.subr.mxu0 0.0
        %187 = vmatpush1.msra.mxu0 0.0
        %188 = vmatprep.subr.mxu0 0.0
        %189 = vmatpush1.msra.mxu0 0.0
        %190 = vmatprep.subr.mxu0 0.0
        %191 = vmatpush1.msra.mxu0 0.0
        %192 = vmatprep.subr.mxu0 0.0
        %193 = vmatpush1.msra.mxu0 0.0
        %194 = vmatprep.subr.mxu0 0.0
        %195 = vmatpush1.msra.mxu0 0.0
        %196 = vmatprep.subr.mxu0 0.0
        %197 = vmatpush1.msra.mxu0 0.0
        %198 = vmatprep.subr.mxu0 0.0
        %199 = vmatpush1.msra.mxu0 0.0
        %200 = vmatprep.subr.mxu0 0.0
        %201 = vmatpush1.msra.mxu0 0.0
        %202 = vmatprep.subr.mxu0 0.0
        %203 = vmatpush1.msra.mxu0 0.0
        %204 = vmatprep.subr.mxu0 0.0
        %205 = vmatpush1.msra.mxu0 0.0
        %206 = vmatprep.subr.mxu0 0.0
        %207 = vmatpush1.msra.mxu0 0.0
        %208 = vmatprep.subr.mxu0 0.0
        %209 = vmatpush1.msra.mxu0 0.0
        %210 = vmatprep.subr.mxu0 0.0
        %211 = vmatpush1.msra.mxu0 0.0
        %212 = vmatprep.subr.mxu0 0.0
        %213 = vmatpush1.msra.mxu0 0.0
        %214 = vmatprep.subr.mxu0 0.0
        %215 = vmatpush1.msra.mxu0 0.0
        %216 = vmatprep.subr.mxu0 0.0
        %217 = vmatpush1.msra.mxu0 0.0
        %218 = vmatprep.subr.mxu0 0.0
        %219 = vmatpush1.msra.mxu0 0.0
        %220 = vmatprep.subr.mxu0 0.0
        %221 = vmatpush1.msra.mxu0 0.0
        %222 = vmatprep.subr.mxu0 0.0
        %223 = vmatpush1.msra.mxu0 0.0
        %224 = vmatprep.subr.mxu0 0.0
        %225 = vmatpush1.msra.mxu0 0.0
        %226 = vmatprep.mubr.f32.mxu0 0.0
        %v227 = vand.u32 %v151, 4294901760
        %v228 = vsub.f32 %v151, %v227
        %v229 = vand.u32 %v228, 4294901760
        %v230 = vsub.f32 %v228, %v229
        %v231 = vand.u32 %v230, 4294901760
        %232 = vmatmul.mubr.f32.gmra.mrb[0].mxu0 %v231
        %v233 = vpop.f32.mrb[0].mxu0
        %v234 = vadd.f32 0.0, %v233
        %v235 = vpop.f32.mrb[0].mxu0
        %236 = vmatprep.mubr.f32.mxu0 0.0
        %v237 = vand.u32 %v154, 4294901760
        %v238 = vsub.f32 %v154, %v237
        %v239 = vand.u32 %v238, 4294901760
        %v240 = vsub.f32 %v238, %v239
        %v241 = vand.u32 %v240, 4294901760
        %242 = vmatmul.mubr.f32.gmra.mrb[0].mxu0 %v241
        %v243 = vpop.f32.mrb[0].mxu0
        %v244 = vadd.f32 0.0, %v243
        %v245 = vpop.f32.mrb[0].mxu0
        %246 = vdwg.mxu0
        %247 = vmatprep.subr.mxu0 0.0
        %v248 = vand.u32 %v147, 4294901760
        %v249 = vsub.f32 %v147, %v248
        %v250 = vand.u32 %v249, 4294901760
        %v251 = vsub.f32 %v249, %v250
        %v252 = vand.u32 %v251, 4294901760
        %253 = vmatpush1.msra.mxu0 %v252
        %254 = vmatprep.subr.mxu0 0.0
        %v255 = vand.u32 %v158, 4294901760
        %v256 = vsub.f32 %v158, %v255
        %v257 = vand.u32 %v256, 4294901760
        %v258 = vsub.f32 %v256, %v257
        %v259 = vand.u32 %v258, 4294901760
        %260 = vmatpush1.msra.mxu0 %v259
        %261 = vmatprep.subr.mxu0 0.0
        %262 = vmatpush1.msra.mxu0 0.0
        %263 = vmatprep.subr.mxu0 0.0
        %264 = vmatpush1.msra.mxu0 0.0
        %265 = vmatprep.subr.mxu0 0.0
        %266 = vmatpush1.msra.mxu0 0.0
        %267 = vmatprep.subr.mxu0 0.0
        %268 = vmatpush1.msra.mxu0 0.0
        %269 = vmatprep.subr.mxu0 0.0
        %270 = vmatpush1.msra.mxu0 0.0
        %271 = vmatprep.subr.mxu0 0.0
        %272 = vmatpush1.msra.mxu0 0.0
        %273 = vmatprep.subr.mxu0 0.0
        %274 = vmatpush1.msra.mxu0 0.0
        %275 = vmatprep.subr.mxu0 0.0
        %276 = vmatpush1.msra.mxu0 0.0
        %277 = vmatprep.subr.mxu0 0.0
        %278 = vmatpush1.msra.mxu0 0.0
        %279 = vmatprep.subr.mxu0 0.0
        %280 = vmatpush1.msra.mxu0 0.0
        %281 = vmatprep.subr.mxu0 0.0
        %282 = vmatpush1.msra.mxu0 0.0
        %283 = vmatprep.subr.mxu0 0.0
        %284 = vmatpush1.msra.mxu0 0.0
        %285 = vmatprep.subr.mxu0 0.0
        %286 = vmatpush1.msra.mxu0 0.0
        %287 = vmatprep.subr.mxu0 0.0
        %288 = vmatpush1.msra.mxu0 0.0
        %289 = vmatprep.subr.mxu0 0.0
        %290 = vmatpush1.msra.mxu0 0.0
        %291 = vmatprep.subr.mxu0 0.0
        %292 = vmatpush1.msra.mxu0 0.0
        %293 = vmatprep.subr.mxu0 0.0
        %294 = vmatpush1.msra.mxu0 0.0
        %295 = vmatprep.subr.mxu0 0.0
        %296 = vmatpush1.msra.mxu0 0.0
        %297 = vmatprep.subr.mxu0 0.0
        %298 = vmatpush1.msra.mxu0 0.0
        %299 = vmatprep.subr.mxu0 0.0
        %300 = vmatpush1.msra.mxu0 0.0
        %301 = vmatprep.subr.mxu0 0.0
        %302 = vmatpush1.msra.mxu0 0.0
        %303 = vmatprep.subr.mxu0 0.0
        %304 = vmatpush1.msra.mxu0 0.0
        %305 = vmatprep.subr.mxu0 0.0
        %306 = vmatpush1.msra.mxu0 0.0
        %307 = vmatprep.subr.mxu0 0.0
        %308 = vmatpush1.msra.mxu0 0.0
        %309 = vmatprep.subr.mxu0 0.0
        %310 = vmatpush1.msra.mxu0 0.0
        %311 = vmatprep.subr.mxu0 0.0
        %312 = vmatpush1.msra.mxu0 0.0
        %313 = vmatprep.subr.mxu0 0.0
        %314 = vmatpush1.msra.mxu0 0.0
        %315 = vmatprep.subr.mxu0 0.0
        %316 = vmatpush1.msra.mxu0 0.0
        %317 = vmatprep.subr.mxu0 0.0
        %318 = vmatpush1.msra.mxu0 0.0
        %319 = vmatprep.subr.mxu0 0.0
        %320 = vmatpush1.msra.mxu0 0.0
        %321 = vmatprep.mubr.f32.mxu0 0.0
        %v322 = vand.u32 %v151, 4294901760
        %323 = vmatmul.mubr.f32.gmra.mrb[0].mxu0 %v322
        %v324 = vpop.f32.mrb[0].mxu0
        %v325 = vadd.f32 %v234, %v324
        %v326 = vpop.f32.mrb[0].mxu0
        %327 = vmatprep.mubr.f32.mxu0 0.0
        %v328 = vand.u32 %v154, 4294901760
        %329 = vmatmul.mubr.f32.gmra.mrb[0].mxu0 %v328
        %v330 = vpop.f32.mrb[0].mxu0
        %v331 = vadd.f32 %v244, %v330
        %v332 = vpop.f32.mrb[0].mxu0
        %333 = vdwg.mxu0
        %334 = vmatprep.subr.mxu0 0.0
        %v335 = vand.u32 %v147, 4294901760
        %v336 = vsub.f32 %v147, %v335
        %337 = vmatpush1.msra.mxu0 %v336
        %338 = vmatprep.subr.mxu0 0.0
        %v339 = vand.u32 %v158, 4294901760
        %v340 = vsub.f32 %v158, %v339
        %341 = vmatpush1.msra.mxu0 %v340
        %342 = vmatprep.subr.mxu0 0.0
        %343 = vmatpush1.msra.mxu0 0.0
        %344 = vmatprep.subr.mxu0 0.0
        %345 = vmatpush1.msra.mxu0 0.0
        %346 = vmatprep.subr.mxu0 0.0
        %347 = vmatpush1.msra.mxu0 0.0
        %348 = vmatprep.subr.mxu0 0.0
        %349 = vmatpush1.msra.mxu0 0.0
        %350 = vmatprep.subr.mxu0 0.0
        %351 = vmatpush1.msra.mxu0 0.0
        %352 = vmatprep.subr.mxu0 0.0
        %353 = vmatpush1.msra.mxu0 0.0
        %354 = vmatprep.subr.mxu0 0.0
        %355 = vmatpush1.msra.mxu0 0.0
        %356 = vmatprep.subr.mxu0 0.0
        %357 = vmatpush1.msra.mxu0 0.0
        %358 = vmatprep.subr.mxu0 0.0
        %359 = vmatpush1.msra.mxu0 0.0
        %360 = vmatprep.subr.mxu0 0.0
        %361 = vmatpush1.msra.mxu0 0.0
        %362 = vmatprep.subr.mxu0 0.0
        %363 = vmatpush1.msra.mxu0 0.0
        %364 = vmatprep.subr.mxu0 0.0
        %365 = vmatpush1.msra.mxu0 0.0
        %366 = vmatprep.subr.mxu0 0.0
        %367 = vmatpush1.msra.mxu0 0.0
        %368 = vmatprep.subr.mxu0 0.0
        %369 = vmatpush1.msra.mxu0 0.0
        %370 = vmatprep.subr.mxu0 0.0
        %371 = vmatpush1.msra.mxu0 0.0
        %372 = vmatprep.subr.mxu0 0.0
        %373 = vmatpush1.msra.mxu0 0.0
        %374 = vmatprep.subr.mxu0 0.0
        %375 = vmatpush1.msra.mxu0 0.0
        %376 = vmatprep.subr.mxu0 0.0
        %377 = vmatpush1.msra.mxu0 0.0
        %378 = vmatprep.subr.mxu0 0.0
        %379 = vmatpush1.msra.mxu0 0.0
        %380 = vmatprep.subr.mxu0 0.0
        %381 = vmatpush1.msra.mxu0 0.0
        %382 = vmatprep.subr.mxu0 0.0
        %383 = vmatpush1.msra.mxu0 0.0
        %384 = vmatprep.subr.mxu0 0.0
        %385 = vmatpush1.msra.mxu0 0.0
        %386 = vmatprep.subr.mxu0 0.0
        %387 = vmatpush1.msra.mxu0 0.0
        %388 = vmatprep.subr.mxu0 0.0
        %389 = vmatpush1.msra.mxu0 0.0
        %390 = vmatprep.subr.mxu0 0.0
        %391 = vmatpush1.msra.mxu0 0.0
        %392 = vmatprep.subr.mxu0 0.0
        %393 = vmatpush1.msra.mxu0 0.0
        %394 = vmatprep.subr.mxu0 0.0
        %395 = vmatpush1.msra.mxu0 0.0
        %396 = vmatprep.subr.mxu0 0.0
        %397 = vmatpush1.msra.mxu0 0.0
        %398 = vmatprep.subr.mxu0 0.0
        %399 = vmatpush1.msra.mxu0 0.0
        %400 = vmatprep.subr.mxu0 0.0
        %401 = vmatpush1.msra.mxu0 0.0
        %402 = vmatprep.mubr.f32.mxu0 0.0
        %v403 = vand.u32 %v151, 4294901760
        %v404 = vsub.f32 %v151, %v403
        %405 = vmatmul.mubr.f32.gmra.mrb[0].mxu0 %v404
        %v406 = vpop.f32.mrb[0].mxu0
        %v407 = vadd.f32 %v325, %v406
        %v408 = vpop.f32.mrb[0].mxu0
        %409 = vmatprep.mubr.f32.mxu0 0.0
        %v410 = vand.u32 %v154, 4294901760
        %v411 = vsub.f32 %v154, %v410
        %412 = vmatmul.mubr.f32.gmra.mrb[0].mxu0 %v411
        %v413 = vpop.f32.mrb[0].mxu0
        %v414 = vadd.f32 %v331, %v413
        %v415 = vpop.f32.mrb[0].mxu0
        %416 = vdwg.mxu0
        %417 = vmatprep.subr.mxu0 0.0
        %v418 = vand.u32 %v147, 4294901760
        %419 = vmatpush1.msra.mxu0 %v418
        %420 = vmatprep.subr.mxu0 0.0
        %v421 = vand.u32 %v158, 4294901760
        %422 = vmatpush1.msra.mxu0 %v421
        %423 = vmatprep.subr.mxu0 0.0
        %424 = vmatpush1.msra.mxu0 0.0
        %425 = vmatprep.subr.mxu0 0.0
        %426 = vmatpush1.msra.mxu0 0.0
        %427 = vmatprep.subr.mxu0 0.0
        %428 = vmatpush1.msra.mxu0 0.0
        %429 = vmatprep.subr.mxu0 0.0
        %430 = vmatpush1.msra.mxu0 0.0
        %431 = vmatprep.subr.mxu0 0.0
        %432 = vmatpush1.msra.mxu0 0.0
        %433 = vmatprep.subr.mxu0 0.0
        %434 = vmatpush1.msra.mxu0 0.0
        %435 = vmatprep.subr.mxu0 0.0
        %436 = vmatpush1.msra.mxu0 0.0
        %437 = vmatprep.subr.mxu0 0.0
        %438 = vmatpush1.msra.mxu0 0.0
        %439 = vmatprep.subr.mxu0 0.0
        %440 = vmatpush1.msra.mxu0 0.0
        %441 = vmatprep.subr.mxu0 0.0
        %442 = vmatpush1.msra.mxu0 0.0
        %443 = vmatprep.subr.mxu0 0.0
        %444 = vmatpush1.msra.mxu0 0.0
        %445 = vmatprep.subr.mxu0 0.0
        %446 = vmatpush1.msra.mxu0 0.0
        %447 = vmatprep.subr.mxu0 0.0
        %448 = vmatpush1.msra.mxu0 0.0
        %449 = vmatprep.subr.mxu0 0.0
        %450 = vmatpush1.msra.mxu0 0.0
        %451 = vmatprep.subr.mxu0 0.0
        %452 = vmatpush1.msra.mxu0 0.0
        %453 = vmatprep.subr.mxu0 0.0
        %454 = vmatpush1.msra.mxu0 0.0
        %455 = vmatprep.subr.mxu0 0.0
        %456 = vmatpush1.msra.mxu0 0.0
        %457 = vmatprep.subr.mxu0 0.0
        %458 = vmatpush1.msra.mxu0 0.0
        %459 = vmatprep.subr.mxu0 0.0
        %460 = vmatpush1.msra.mxu0 0.0
        %461 = vmatprep.subr.mxu0 0.0
        %462 = vmatpush1.msra.mxu0 0.0
        %463 = vmatprep.subr.mxu0 0.0
        %464 = vmatpush1.msra.mxu0 0.0
        %465 = vmatprep.subr.mxu0 0.0
        %466 = vmatpush1.msra.mxu0 0.0
        %467 = vmatprep.subr.mxu0 0.0
        %468 = vmatpush1.msra.mxu0 0.0
        %469 = vmatprep.subr.mxu0 0.0
        %470 = vmatpush1.msra.mxu0 0.0
        %471 = vmatprep.subr.mxu0 0.0
        %472 = vmatpush1.msra.mxu0 0.0
        %473 = vmatprep.subr.mxu0 0.0
        %474 = vmatpush1.msra.mxu0 0.0
        %475 = vmatprep.subr.mxu0 0.0
        %476 = vmatpush1.msra.mxu0 0.0
        %477 = vmatprep.subr.mxu0 0.0
        %478 = vmatpush1.msra.mxu0 0.0
        %479 = vmatprep.subr.mxu0 0.0
        %480 = vmatpush1.msra.mxu0 0.0
        %481 = vmatprep.subr.mxu0 0.0
        %482 = vmatpush1.msra.mxu0 0.0
        %483 = vmatprep.mubr.f32.mxu0 0.0
        %v484 = vand.u32 %v151, 4294901760
        %v485 = vsub.f32 %v151, %v484
        %v486 = vand.u32 %v485, 4294901760
        %487 = vmatmul.mubr.f32.gmra.mrb[0].mxu0 %v486
        %v488 = vpop.f32.mrb[0].mxu0
        %v489 = vadd.f32 %v407, %v488
        %v490 = vpop.f32.mrb[0].mxu0
        %491 = vmatprep.mubr.f32.mxu0 0.0
        %v492 = vand.u32 %v154, 4294901760
        %v493 = vsub.f32 %v154, %v492
        %v494 = vand.u32 %v493, 4294901760
        %495 = vmatmul.mubr.f32.gmra.mrb[0].mxu0 %v494
        %v496 = vpop.f32.mrb[0].mxu0
        %v497 = vadd.f32 %v414, %v496
        %v498 = vpop.f32.mrb[0].mxu0
        %499 = vdwg.mxu0
        %500 = vmatprep.subr.mxu0 0.0
        %v501 = vand.u32 %v147, 4294901760
        %v502 = vsub.f32 %v147, %v501
        %v503 = vand.u32 %v502, 4294901760
        %504 = vmatpush1.msra.mxu0 %v503
        %505 = vmatprep.subr.mxu0 0.0
        %v506 = vand.u32 %v158, 4294901760
        %v507 = vsub.f32 %v158, %v506
        %v508 = vand.u32 %v507, 4294901760
        %509 = vmatpush1.msra.mxu0 %v508
        %510 = vmatprep.subr.mxu0 0.0
        %511 = vmatpush1.msra.mxu0 0.0
        %512 = vmatprep.subr.mxu0 0.0
        %513 = vmatpush1.msra.mxu0 0.0
        %514 = vmatprep.subr.mxu0 0.0
        %515 = vmatpush1.msra.mxu0 0.0
        %516 = vmatprep.subr.mxu0 0.0
        %517 = vmatpush1.msra.mxu0 0.0
        %518 = vmatprep.subr.mxu0 0.0
        %519 = vmatpush1.msra.mxu0 0.0
        %520 = vmatprep.subr.mxu0 0.0
        %521 = vmatpush1.msra.mxu0 0.0
        %522 = vmatprep.subr.mxu0 0.0
        %523 = vmatpush1.msra.mxu0 0.0
        %524 = vmatprep.subr.mxu0 0.0
        %525 = vmatpush1.msra.mxu0 0.0
        %526 = vmatprep.subr.mxu0 0.0
        %527 = vmatpush1.msra.mxu0 0.0
        %528 = vmatprep.subr.mxu0 0.0
        %529 = vmatpush1.msra.mxu0 0.0
        %530 = vmatprep.subr.mxu0 0.0
        %531 = vmatpush1.msra.mxu0 0.0
        %532 = vmatprep.subr.mxu0 0.0
        %533 = vmatpush1.msra.mxu0 0.0
        %534 = vmatprep.subr.mxu0 0.0
        %535 = vmatpush1.msra.mxu0 0.0
        %536 = vmatprep.subr.mxu0 0.0
        %537 = vmatpush1.msra.mxu0 0.0
        %538 = vmatprep.subr.mxu0 0.0
        %539 = vmatpush1.msra.mxu0 0.0
        %540 = vmatprep.subr.mxu0 0.0
        %541 = vmatpush1.msra.mxu0 0.0
        %542 = vmatprep.subr.mxu0 0.0
        %543 = vmatpush1.msra.mxu0 0.0
        %544 = vmatprep.subr.mxu0 0.0
        %545 = vmatpush1.msra.mxu0 0.0
        %546 = vmatprep.subr.mxu0 0.0
        %547 = vmatpush1.msra.mxu0 0.0
        %548 = vmatprep.subr.mxu0 0.0
        %549 = vmatpush1.msra.mxu0 0.0
        %550 = vmatprep.subr.mxu0 0.0
        %551 = vmatpush1.msra.mxu0 0.0
        %552 = vmatprep.subr.mxu0 0.0
        %553 = vmatpush1.msra.mxu0 0.0
        %554 = vmatprep.subr.mxu0 0.0
        %555 = vmatpush1.msra.mxu0 0.0
        %556 = vmatprep.subr.mxu0 0.0
        %557 = vmatpush1.msra.mxu0 0.0
        %558 = vmatprep.subr.mxu0 0.0
        %559 = vmatpush1.msra.mxu0 0.0
        %560 = vmatprep.subr.mxu0 0.0
        %561 = vmatpush1.msra.mxu0 0.0
        %562 = vmatprep.subr.mxu0 0.0
        %563 = vmatpush1.msra.mxu0 0.0
        %564 = vmatprep.subr.mxu0 0.0
        %565 = vmatpush1.msra.mxu0 0.0
        %566 = vmatprep.subr.mxu0 0.0
        %567 = vmatpush1.msra.mxu0 0.0
        %568 = vmatprep.subr.mxu0 0.0
        %569 = vmatpush1.msra.mxu0 0.0
        %570 = vmatprep.mubr.f32.mxu0 0.0
        %v571 = vand.u32 %v151, 4294901760
        %572 = vmatmul.mubr.f32.gmra.mrb[0].mxu0 %v571
        %v573 = vpop.f32.mrb[0].mxu0
        %v574 = vadd.f32 %v489, %v573
        %v575 = vpop.f32.mrb[0].mxu0
        %576 = vmatprep.mubr.f32.mxu0 0.0
        %v577 = vand.u32 %v154, 4294901760
        %578 = vmatmul.mubr.f32.gmra.mrb[0].mxu0 %v577
        %v579 = vpop.f32.mrb[0].mxu0
        %v580 = vadd.f32 %v497, %v579
        %v581 = vpop.f32.mrb[0].mxu0
        %582 = vdwg.mxu0
        %583 = vmatprep.subr.mxu0 0.0
        %v584 = vand.u32 %v147, 4294901760
        %585 = vmatpush1.msra.mxu0 %v584
        %586 = vmatprep.subr.mxu0 0.0
        %v587 = vand.u32 %v158, 4294901760
        %588 = vmatpush1.msra.mxu0 %v587
        %589 = vmatprep.subr.mxu0 0.0
        %590 = vmatpush1.msra.mxu0 0.0
        %591 = vmatprep.subr.mxu0 0.0
        %592 = vmatpush1.msra.mxu0 0.0
        %593 = vmatprep.subr.mxu0 0.0
        %594 = vmatpush1.msra.mxu0 0.0
        %595 = vmatprep.subr.mxu0 0.0
        %596 = vmatpush1.msra.mxu0 0.0
        %597 = vmatprep.subr.mxu0 0.0
        %598 = vmatpush1.msra.mxu0 0.0
        %599 = vmatprep.subr.mxu0 0.0
        %600 = vmatpush1.msra.mxu0 0.0
        %601 = vmatprep.subr.mxu0 0.0
        %602 = vmatpush1.msra.mxu0 0.0
        %603 = vmatprep.subr.mxu0 0.0
        %604 = vmatpush1.msra.mxu0 0.0
        %605 = vmatprep.subr.mxu0 0.0
        %606 = vmatpush1.msra.mxu0 0.0
        %607 = vmatprep.subr.mxu0 0.0
        %608 = vmatpush1.msra.mxu0 0.0
        %609 = vmatprep.subr.mxu0 0.0
        %610 = vmatpush1.msra.mxu0 0.0
        %611 = vmatprep.subr.mxu0 0.0
        %612 = vmatpush1.msra.mxu0 0.0
        %613 = vmatprep.subr.mxu0 0.0
        %614 = vmatpush1.msra.mxu0 0.0
        %615 = vmatprep.subr.mxu0 0.0
        %616 = vmatpush1.msra.mxu0 0.0
        %617 = vmatprep.subr.mxu0 0.0
        %618 = vmatpush1.msra.mxu0 0.0
        %619 = vmatprep.subr.mxu0 0.0
        %620 = vmatpush1.msra.mxu0 0.0
        %621 = vmatprep.subr.mxu0 0.0
        %622 = vmatpush1.msra.mxu0 0.0
        %623 = vmatprep.subr.mxu0 0.0
        %624 = vmatpush1.msra.mxu0 0.0
        %625 = vmatprep.subr.mxu0 0.0
        %626 = vmatpush1.msra.mxu0 0.0
        %627 = vmatprep.subr.mxu0 0.0
        %628 = vmatpush1.msra.mxu0 0.0
        %629 = vmatprep.subr.mxu0 0.0
        %630 = vmatpush1.msra.mxu0 0.0
        %631 = vmatprep.subr.mxu0 0.0
        %632 = vmatpush1.msra.mxu0 0.0
        %633 = vmatprep.subr.mxu0 0.0
        %634 = vmatpush1.msra.mxu0 0.0
        %635 = vmatprep.subr.mxu0 0.0
        %636 = vmatpush1.msra.mxu0 0.0
        %637 = vmatprep.subr.mxu0 0.0
        %638 = vmatpush1.msra.mxu0 0.0
        %639 = vmatprep.subr.mxu0 0.0
        %640 = vmatpush1.msra.mxu0 0.0
        %641 = vmatprep.subr.mxu0 0.0
        %642 = vmatpush1.msra.mxu0 0.0
        %643 = vmatprep.subr.mxu0 0.0
        %644 = vmatpush1.msra.mxu0 0.0
        %645 = vmatprep.subr.mxu0 0.0
        %646 = vmatpush1.msra.mxu0 0.0
        %647 = vmatprep.subr.mxu0 0.0
        %648 = vmatpush1.msra.mxu0 0.0
        %649 = vmatprep.mubr.f32.mxu0 0.0
        %v650 = vand.u32 %v151, 4294901760
        %651 = vmatmul.mubr.f32.gmra.mrb[0].mxu0 %v650
        %v652 = vpop.f32.mrb[0].mxu0
        %v653 = vadd.f32 %v574, %v652
        %v654 = vpop.f32.mrb[0].mxu0
        %655 = vmatprep.mubr.f32.mxu0 0.0
        %v656 = vand.u32 %v154, 4294901760
        %657 = vmatmul.mubr.f32.gmra.mrb[0].mxu0 %v656
        %v658 = vpop.f32.mrb[0].mxu0
        %v659 = vadd.f32 %v580, %v658
        %v660 = vpop.f32.mrb[0].mxu0
        %661 = vdwg.mxu0
        %662 = vmax.xlane.f32.xlu0 %v653
        %v663 = vpop.xlane.xlu0 %662
        %664 = vmax.xlane.f32.xlu0 %v659
        %v665 = vpop.xlane.xlu0 %664
        %v666 = vsub.f32 %v653, %v663
        %v667 = vsub.f32 %v659, %v665
        %v668 = vmul.f32 %v666, 1.442695
        %v669 = vpow.pop %v668
        %v670 = vmul.f32 %v667, 1.442695
        %v671 = vpow.pop %v670
        %672 = vadd.xlane.f32.xlu0 %v669
        %v673 = vpop.xlane.xlu0 %672
        %674 = vadd.xlane.f32.xlu0 %v671
        %v675 = vpop.xlane.xlu0 %674
        %v676 = vrcp.pop %v673
        %v677 = vrcp.pop %v675
        %v678 = vmul.f32 %v673, %v676
        %v679 = vmul.f32 %v675, %v677
        %v680 = vsub.f32 2.0, %v678
        %v681 = vsub.f32 2.0, %v679
        %v682 = vmul.f32 %v676, %v680
        %v683 = vmul.f32 %v677, %v681
        %v684 = vmul.f32 %v669, %v682
        %v685 = vmul.f32 %v671, %v683
        %686 = vst [vmem:[%s137] sm:$0xff] %v684
        %687 = vst [vmem:[%s137 + $0x8] sm:$0xff] %v685
        %s688 = sand.u32 %s71, 1
        %s689 = scalar_lea.sflag [#allocation3], %s688
        %s690 = sand.u32 %s71, 1
        %s691 = smul.addr %s690, 16
        %s692 = scalar_lea.vmem [#allocation2], %s691
        // Predicated region
        $region29: #{tpu_custom_call.1} parent=27 // pred_check
          %p693 = pneg %p81
        $region30: #{tpu_custom_call.1} parent=27 // pred_check_branch
          %695 = sbr.rel (%p693) target = $region32
        $region31: #{tpu_custom_call.1} parent=27 // pred_region
          %s696 = smul.u32 2, %s16
          %s698 = ssub.s32 256, 256
          %699 = vsyncadd %s689, %s698
          %s700 = smul.addr %s696, 128
          %s701 = scalar_lea.hbm %s2, %s700
          %s702 = sshll.u32 %s692, 4
          %s703 = int_to_ptr.vmem [resolvable:$true] %s702
          %708 = dma.vmem_to_hbm [thread:$0]  %s703, 256, %s701, %s689, 128, 128, 8
        $region32: #{tpu_custom_call.1} parent=27 // pred_fallthru
          _
      $region28: #{tpu_custom_call.1} parent=5 // pred_fallthru
        _
      %p709 = scmp.le.s32.totalorder 2, %s11
      // Predicated region
      $region33: #{tpu_custom_call.1} parent=5 // pred_check
        %p710 = pneg %p709
      $region34: #{tpu_custom_call.1} parent=5 // pred_check_branch
        %712 = sbr.rel (%p710) target = $region36
      $region35: #{tpu_custom_call.1} parent=5 // pred_region
        %s713 = ssub.s32 %s11, 2
        // Predicated region
        $region37: #{tpu_custom_call.1} parent=35 // pred_check
          %p714 = pneg %p87
        $region38: #{tpu_custom_call.1} parent=35 // pred_check_branch
          %716 = sbr.rel (%p714) target = $region40
        $region39: #{tpu_custom_call.1} parent=35 // pred_region
          %s717 = sand.u32 %s72, 1
          %s718 = scalar_lea.sflag [#allocation3], %s717
          %s719 = sand.u32 %s72, 1
          %s720 = smul.addr %s719, 16
          %s721 = scalar_lea.vmem [#allocation2], %s720
          %722 = dma.done %s718, 256
        $region40: #{tpu_custom_call.1} parent=35 // pred_fallthru
          _
      $region36: #{tpu_custom_call.1} parent=5 // pred_fallthru
        _
    $region6: #{tpu_custom_call.1} parent=1 // loop_footer
      %s15 = sadd.s32 1, %s11
    $region7: #{tpu_custom_call.1} parent=1 // loop_footer_branch
      %10 = sbr.rel target = $region3
    $region8: #{tpu_custom_call.1} parent=1 // loop_exit
      _
    %723 = vsyncpa [#allocation3], 1
    %s724 = scalar_lea.sflag [#allocation3], 1
    %725 = vsyncpa %s724, 1

</llo_original>
